<compile_context>
chip_gen: v6e
topology: v6e:2x2x1
jax: 0.10.0
libtpu: 0.0.40
codegen_flags: <defaults>
</compile_context>

<pallas_src>
import functools

import jax
import jax.numpy as jnp
from jax.experimental import pallas as pl
from jax.experimental.pallas import tpu as pltpu


def _round_up(x, m):
    return (x + m - 1) // m * m


def _round_down(x, m):
    return x // m * m


def _tpu_generation():
    """Best-effort TPU generation (4/5/6/7); 0 => unknown/conservative."""
    try:
        kind = jax.devices()[0].device_kind.lower()
    except Exception:
        return 0
    for gen, tags in ((7, ("v7", "tpu7", "7x")),
                      (6, ("v6",)),
                      (5, ("v5",)),
                      (4, ("v4",))):
        if any(t in kind for t in tags):
            return gen
    return 0


# Per-generation VMEM planning budget, vmem_limit cap, and target M tile.
_VMEM_BUDGET = {4: 96 << 20, 5: 100 << 20, 6: 100 << 20, 7: 44 << 20, 0: 56 << 20}
_VMEM_CAP    = {4: 104 << 20, 5: 110 << 20, 6: 110 << 20, 7: 52 << 20, 0: 64 << 20}
_TARGET_BM   = {4: 512, 5: 512, 6: 1024, 7: 512, 0: 512}


# ----------------------------- kernels --------------------------------------


def _ffn_kernel_acc(x_ref, w1_ref, b1_ref, w2_ref, b2_ref, o_ref, acc_ref):
    # x_ref: (block_m, d_model)   w1_ref: (d_model, block_h)  b1_ref: (1, block_h)
    # w2_ref: (block_h, d_model)  b2_ref: (1, d_model)
    # o_ref:  (block_m, d_model)  acc_ref: (block_m, d_model) f32 scratch
    k = pl.program_id(1)

    @pl.when(k == 0)
    def _():
        acc_ref[...] = jnp.zeros_like(acc_ref)

    # First matmul on the MXU with f32 accumulation; bias + ReLU in f32 (VPU).
    h = jnp.dot(x_ref[...], w1_ref[...], preferred_element_type=jnp.float32)
    h = jnp.maximum(h + b1_ref[...].astype(jnp.float32), 0.0)
    # dropout -> identity (eval mode)

    # Second matmul for this hidden chunk, accumulated across chunks in f32.
    acc_ref[...] += jnp.dot(h.astype(w2_ref.dtype), w2_ref[...],
                            preferred_element_type=jnp.float32)

    @pl.when(k == pl.num_programs(1) - 1)
    def _():
        o_ref[...] = (acc_ref[...]
                      + b2_ref[...].astype(jnp.float32)).astype(o_ref.dtype)


def _ffn_kernel_single(x_ref, w1_ref, b1_ref, w2_ref, b2_ref, o_ref):
    # Fast path when the whole hidden dim fits one tile: no scratch RMW.
    h = jnp.dot(x_ref[...], w1_ref[...], preferred_element_type=jnp.float32)
    h = jnp.maximum(h + b1_ref[...].astype(jnp.float32), 0.0)
    # dropout -> identity (eval mode)
    y = jnp.dot(h.astype(w2_ref.dtype), w2_ref[...],
                preferred_element_type=jnp.float32)
    o_ref[...] = (y + b2_ref[...].astype(jnp.float32)).astype(o_ref.dtype)


# --------------------------- tile planning ----------------------------------


def _plan_tiles(m, d_model, hidden, csize, osize, gen, block_m, block_h):
    budget = _VMEM_BUDGET[gen]
    target_bm = _TARGET_BM[gen]

    # ---- block_m -------------------------------------------------------
    if block_m is None:
        block_m = target_bm if m >= target_bm else _round_up(m, 16)
    else:
        block_m = max(16, _round_up(block_m, 16))
    block_m = min(block_m, _round_up(m, 16))

    def weight_bh_max(bm):
        # VMEM left for the (double-buffered) W1/W2 tiles once x/out tiles,
        # the f32 accumulator and the f32 + low-precision intermediate
        # activations for this bm are accounted for.
        fixed = (2 * bm * d_model * csize        # x tiles (2-deep)
                 + 2 * bm * d_model * osize      # out tiles (2-deep)
                 + bm * d_model * 4              # f32 acc scratch
                 + 2 * d_model * 4               # b2 (tiny)
                 + (1 << 20))                    # slack
        per_h = (bm * (4 + csize)                # f32 h + cast for 2nd matmul
                 + 4 * d_model * csize           # W1 + W2 tiles, 2-deep
                 + 2 * 4)                        # b1 (tiny)
        return (budget - fixed) // per_h

    # Shrink block_m until a useful (>=512 or full) hidden tile fits VMEM.
    while block_m > 256 and weight_bh_max(block_m) < min(hidden, 512):
        block_m = max(256, _round_up(block_m // 2, 16))
    m_pad = _round_up(m, block_m)

    # v7x: the two TensorCores shard the "parallel" axis -> make sure it has
    # at least 2 programs, otherwise one core idles.
    if gen == 7:
        while m_pad // block_m < 2 and block_m >= 512:
            block_m //= 2
            m_pad = _round_up(m, block_m)

    # ---- block_h -------------------------------------------------------
    bh_max = weight_bh_max(block_m)
    if block_h is None:
        if bh_max >= hidden:
            block_h = hidden                     # weights fully VMEM-resident
        else:
            block_h = max(128, _round_down(min(bh_max, hidden), 128))
    else:
        block_h = min(block_h, hidden)
        if block_h < hidden:
            block_h = max(128, _round_up(block_h, 128))
    hidden_pad = hidden if block_h >= hidden else _round_up(hidden, block_h)

    return block_m, m_pad, block_h, hidden_pad


# ------------------------------ wrapper --------------------------------------


@functools.partial(jax.jit, static_argnames=("block_m", "block_h", "compute_dtype"))
def positionwise_feed_forward(x, w1, b1, w2, b2, *, block_m=None, block_h=None,
                              compute_dtype=jnp.bfloat16):
    """x: [batch, seq, d_model]; w1: [d_model, hidden]; w2: [hidden, d_model].

    Weights are stored pre-transposed (in, out), equivalent to nn.Linear's
    x @ W.T + b. Matmuls run in `compute_dtype` (bf16 MXU fast path by
    default); accumulation, biases and ReLU stay in f32. Pass
    compute_dtype=jnp.float32 for full-precision matmuls.
    """
    batch, seq, d_model = x.shape
    hidden = w1.shape[1]
    m = batch * seq

    out_dtype = x.dtype
    compute_dtype = jnp.dtype(compute_dtype)
    csize = compute_dtype.itemsize
    osize = jnp.dtype(out_dtype).itemsize

    gen = _tpu_generation()
    block_m, m_pad, block_h, hidden_pad = _plan_tiles(
        m, d_model, hidden, csize, osize, gen, block_m, block_h)

    # ---- cast to the MXU fast path & lay out operands ----------------------
    x2d = x.reshape(m, d_model).astype(compute_dtype)
    w1c = w1.astype(compute_dtype)
    w2c = w2.astype(compute_dtype)
    if m_pad != m:
        x2d = jnp.pad(x2d, ((0, m_pad - m), (0, 0)))
    b1_2d = b1.reshape(1, hidden)
    b2_2d = b2.reshape(1, d_model)
    if hidden_pad != hidden:
        # Zero-padded hidden columns give ReLU(0 + 0) = 0 and contribute
        # nothing through the zero-padded W2 rows -> numerically a no-op.
        w1c = jnp.pad(w1c, ((0, 0), (0, hidden_pad - hidden)))
        b1_2d = jnp.pad(b1_2d, ((0, 0), (0, hidden_pad - hidden)))
        w2c = jnp.pad(w2c, ((0, hidden_pad - hidden), (0, 0)))

    grid_m = m_pad // block_m
    grid_h = hidden_pad // block_h

    # ---- VMEM limit + cost estimate (non-doubled footprint) ----------------
    footprint = (2 * block_m * d_model * csize        # x tiles
                 + 2 * block_m * d_model * osize      # out tiles
                 + block_m * d_model * 4              # f32 acc scratch
                 + block_m * block_h * (4 + csize)    # f32 h + cast
                 + 4 * d_model * block_h * csize      # W1+W2 tiles, 2-deep
                 + 2 * (block_h + d_model) * 4)       # biases
    vmem_limit = int(min(max(footprint + (4 << 20), 32 << 20), _VMEM_CAP[gen]))

    bias_size = jnp.dtype(b1.dtype).itemsize
    weight_fetches = 1 if grid_h == 1 else grid_m     # weights re-stream per M tile
    cost = pl.CostEstimate(
        flops=4 * m_pad * d_model * hidden_pad,
        transcendentals=0,
        bytes_accessed=int(weight_fetches * 2 * d_model * hidden_pad * csize
                           + m_pad * d_model * (csize + osize)
                           + (hidden_pad + d_model) * bias_size),
    )

    in_specs = [
        pl.BlockSpec((block_m, d_model), lambda i, k: (i, 0)),
        pl.BlockSpec((d_model, block_h), lambda i, k: (0, k)),
        pl.BlockSpec((1, block_h), lambda i, k: (0, k)),
        pl.BlockSpec((block_h, d_model), lambda i, k: (k, 0)),
        pl.BlockSpec((1, d_model), lambda i, k: (0, 0)),
    ]
    out_spec = pl.BlockSpec((block_m, d_model), lambda i, k: (i, 0))

    if grid_h == 1:
        kernel = _ffn_kernel_single
        scratch = []
    else:
        kernel = _ffn_kernel_acc
        scratch = [pltpu.VMEM((block_m, d_model), jnp.float32)]

    out2d = pl.pallas_call(
        kernel,
        out_shape=jax.ShapeDtypeStruct((m_pad, d_model), out_dtype),
        grid_spec=pltpu.PrefetchScalarGridSpec(
            num_scalar_prefetch=0,
            grid=(grid_m, grid_h),
            in_specs=in_specs,
            out_specs=out_spec,
            scratch_shapes=scratch,
        ),
        compiler_params=pltpu.CompilerParams(
            dimension_semantics=("parallel", "arbitrary"),
            vmem_limit_bytes=vmem_limit,
        ),
        cost_estimate=cost,
    )(x2d, w1c, b1_2d, w2c, b2_2d)

    if m_pad != m:
        out2d = out2d[:m]
    return out2d.reshape(batch, seq, d_model)


def init_params(key, d_model, hidden, dtype=jnp.float32):
    """nn.Linear-style init: U(-1/sqrt(fan_in), 1/sqrt(fan_in)).

    Weights are returned already transposed to (in, out) layout.
    """
    k1, k2, k3, k4 = jax.random.split(key, 4)
    bound1 = 1.0 / jnp.sqrt(d_model)
    bound2 = 1.0 / jnp.sqrt(hidden)
    w1 = jax.random.uniform(k1, (d_model, hidden), dtype, -bound1, bound1)
    b1 = jax.random.uniform(k2, (hidden,), dtype, -bound1, bound1)
    w2 = jax.random.uniform(k3, (hidden, d_model), dtype, -bound2, bound2)
    b2 = jax.random.uniform(k4, (d_model,), dtype, -bound2, bound2)
    return w1, b1, w2, b2


if __name__ == "__main__":
    key = jax.random.PRNGKey(0)
    kx1, kp1, kx2, kp2, kx3, kp3 = jax.random.split(key, 6)

    # 1) Toy shapes at module scale; exact f32 path, single hidden tile.
    batch, seq, d_model, hidden = 2, 8, 32, 64
    x = jax.random.normal(kx1, (batch, seq, d_model), jnp.float32)
    w1, b1, w2, b2 = init_params(kp1, d_model, hidden)
    out = jax.block_until_ready(
        positionwise_feed_forward(x, w1, b1, w2, b2,
                                  compute_dtype=jnp.float32))
    ref = jnp.maximum(x @ w1 + b1, 0.0) @ w2 + b2
    assert out.shape == (batch, seq, d_model)
    assert jnp.allclose(out, ref, atol=1e-5, rtol=1e-5)

    # 2) Multiple M tiles + hidden-axis accumulation path (f32 compute).
    batch, seq, d_model, hidden = 2, 64, 128, 256
    x = jax.random.normal(kx2, (batch, seq, d_model), jnp.float32)
    w1, b1, w2, b2 = init_params(kp2, d_model, hidden)
    out = jax.block_until_ready(
        positionwise_feed_forward(x, w1, b1, w2, b2, block_m=64, block_h=128,
                                  compute_dtype=jnp.float32))
    ref = jnp.maximum(x @ w1 + b1, 0.0) @ w2 + b2
    assert jnp.allclose(out, ref, atol=1e-3, rtol=1e-3)

    # 3) Default production recipe: bf16 MXU path with f32 accumulation.
    out_bf16 = jax.block_until_ready(
        positionwise_feed_forward(x.astype(jnp.bfloat16),
                                  w1, b1, w2, b2))
    assert out_bf16.dtype == jnp.bfloat16
    assert jnp.allclose(out_bf16.astype(jnp.float32), ref, atol=1e-1, rtol=1e-1)

    # 4) Ragged M and non-multiple-of-128 hidden (padded hidden path).
    batch, seq, d_model, hidden = 2, 7, 64, 160
    x = jax.random.normal(kx3, (batch, seq, d_model), jnp.float32)
    w1, b1, w2, b2 = init_params(kp3, d_model, hidden)
    out = jax.block_until_ready(
        positionwise_feed_forward(x, w1, b1, w2, b2, block_h=128,
                                  compute_dtype=jnp.float32))
    ref = jnp.maximum(x @ w1 + b1, 0.0) @ w2 + b2
    assert jnp.allclose(out, ref, atol=1e-4, rtol=1e-4)

    print("KERNEL_OK")
</pallas_src>

<mosaic_0001>
module attributes {stable_mosaic.version = 11 : i64} {
  func.func @_ffn_kernel_single(%arg0: i32, %arg1: i32, %arg2: memref<16x32xf32, #tpu.memory_space<vmem>>, %arg3: memref<32x64xf32, #tpu.memory_space<vmem>>, %arg4: memref<1x64xf32, #tpu.memory_space<vmem>>, %arg5: memref<64x32xf32, #tpu.memory_space<vmem>>, %arg6: memref<1x32xf32, #tpu.memory_space<vmem>>, %arg7: memref<16x32xf32, #tpu.memory_space<vmem>>) attributes {dimension_semantics = [#tpu.dimension_semantics<parallel>, #tpu.dimension_semantics<arbitrary>], iteration_bounds = array<i64: 1, 1>, scalar_prefetch = 0 : i64, scratch_operands = 0 : i64, tpu.core_type = #tpu.core_type<tc>, window_params = [{transform_indices = @transform_0, window_bounds = array<i64: 16, 32>}, {transform_indices = @transform_1, window_bounds = array<i64: 32, 64>}, {transform_indices = @transform_2, window_bounds = array<i64: 1, 64>}, {transform_indices = @transform_3, window_bounds = array<i64: 64, 32>}, {pipeline_mode = #tpu.pipeline_mode<synchronous>, transform_indices = @transform_4, window_bounds = array<i64: 1, 32>}, {transform_indices = @transform_5, window_bounds = array<i64: 16, 32>}]} {
    %c0 = arith.constant 0 : index
    %c0_0 = arith.constant 0 : index
    %0 = vector.load %arg2[%c0, %c0_0] : memref<16x32xf32, #tpu.memory_space<vmem>>, vector<16x32xf32>
    %c0_1 = arith.constant 0 : index
    %c0_2 = arith.constant 0 : index
    %1 = vector.load %arg3[%c0_1, %c0_2] : memref<32x64xf32, #tpu.memory_space<vmem>>, vector<32x64xf32>
    %cst = arith.constant dense<0.000000e+00> : vector<16x64xf32>
    %2 = tpu.matmul %0, %1, %cst {dimension_numbers = #tpu.dot_dimension_numbers<[1], [0], [0], [1], [0, 0, 1, 1], [], []>} : vector<16x32xf32>, vector<32x64xf32>, vector<16x64xf32> -> vector<16x64xf32>
    %c0_3 = arith.constant 0 : index
    %c0_4 = arith.constant 0 : index
    %3 = vector.load %arg4[%c0_3, %c0_4] : memref<1x64xf32, #tpu.memory_space<vmem>>, vector<1x64xf32>
    %4 = vector.broadcast %3 : vector<1x64xf32> to vector<16x64xf32>
    %5 = arith.addf %2, %4 : vector<16x64xf32>
    %cst_5 = arith.constant 0.000000e+00 : f32
    %6 = vector.broadcast %cst_5 : f32 to vector<16x64xf32>
    %7 = arith.maximumf %5, %6 : vector<16x64xf32>
    %c0_6 = arith.constant 0 : index
    %c0_7 = arith.constant 0 : index
    %8 = vector.load %arg5[%c0_6, %c0_7] : memref<64x32xf32, #tpu.memory_space<vmem>>, vector<64x32xf32>
    %cst_8 = arith.constant dense<0.000000e+00> : vector<16x32xf32>
    %9 = tpu.matmul %7, %8, %cst_8 {dimension_numbers = #tpu.dot_dimension_numbers<[1], [0], [0], [1], [0, 0, 1, 1], [], []>} : vector<16x64xf32>, vector<64x32xf32>, vector<16x32xf32> -> vector<16x32xf32>
    %c0_9 = arith.constant 0 : index
    %c0_10 = arith.constant 0 : index
    %10 = vector.load %arg6[%c0_9, %c0_10] : memref<1x32xf32, #tpu.memory_space<vmem>>, vector<1x32xf32>
    %11 = vector.broadcast %10 : vector<1x32xf32> to vector<16x32xf32>
    %12 = arith.addf %9, %11 : vector<16x32xf32>
    %c0_11 = arith.constant 0 : index
    %c0_12 = arith.constant 0 : index
    %13 = vector.load %arg7[%c0_11, %c0_12] : memref<16x32xf32, #tpu.memory_space<vmem>>, vector<16x32xf32>
    tpu.vector_store %arg7[%c0_11, %c0_12], %12 {strides = array<i32>} : memref<16x32xf32, #tpu.memory_space<vmem>>, vector<16x32xf32>,
    return
  }
  func.func @transform_0(%arg0: i32, %arg1: i32) -> (i32, i32) {
    %c0_i32 = arith.constant 0 : i32
    %c0_i32_0 = arith.constant 0 : i32
    return %arg0, %c0_i32 : i32, i32
  }
  func.func @transform_1(%arg0: i32, %arg1: i32) -> (i32, i32) {
    %c0_i32 = arith.constant 0 : i32
    %c0_i32_0 = arith.constant 0 : i32
    return %c0_i32, %arg1 : i32, i32
  }
  func.func @transform_2(%arg0: i32, %arg1: i32) -> (i32, i32) {
    %c0_i32 = arith.constant 0 : i32
    %c0_i32_0 = arith.constant 0 : i32
    return %c0_i32, %arg1 : i32, i32
  }
  func.func @transform_3(%arg0: i32, %arg1: i32) -> (i32, i32) {
    %c0_i32 = arith.constant 0 : i32
    %c0_i32_0 = arith.constant 0 : i32
    return %arg1, %c0_i32 : i32, i32
  }
  func.func @transform_4(%arg0: i32, %arg1: i32) -> (i32, i32) {
    %c0_i32 = arith.constant 0 : i32
    %c0_i32_0 = arith.constant 0 : i32
    %c0_i32_1 = arith.constant 0 : i32
    return %c0_i32, %c0_i32_0 : i32, i32
  }
  func.func @transform_5(%arg0: i32, %arg1: i32) -> (i32, i32) {
    %c0_i32 = arith.constant 0 : i32
    %c0_i32_0 = arith.constant 0 : i32
    return %arg0, %c0_i32 : i32, i32
  }
}

</mosaic_0001>

<llo_original>
// kernel: positionwise_feed_forward.1
$region0: #{positionwise_feed_forward.1}
  #allocation0 [shape = 'u32[]', space=smem, size = 0x4, offset = 0x4, fixed_abs, tag = 'smem constant byte address 0x4 - core index']
  #allocation1 [shape = 'u32[144,128]{1,0:T(1,128)}', space=vmem, size = 0x12000, scoped, tag = 'internal scratch']
  %s0 = inlined_call_operand.vmem [shape: f32[16,32], index: 0, kind: input, shape index: {}]
  %s1 = inlined_call_operand.vmem [shape: f32[32,64], index: 1, kind: input, shape index: {}]
  %s2 = inlined_call_operand.vmem [shape: f32[1,64], index: 2, kind: input, shape index: {}]
  %s3 = inlined_call_operand.vmem [shape: f32[64,32], index: 3, kind: input, shape index: {}]
  %s4 = inlined_call_operand.vmem [shape: f32[1,32], index: 4, kind: input, shape index: {}]
  %s5 = inlined_call_operand.hbm [shape: f32[16,32], index: 5, kind: output, shape index: {}]
  %s6 = sld [smem:[#allocation0]]
  $region30: #{positionwise_feed_forward.1} parent=0
    _
  %s8 = ssub.s32 1, %s6
  %s9 = scalar_select 0, %s8, %s6
  $region1: #{positionwise_feed_forward.1} parent=0
    #allocation2 [shape = 'u8[8192]{0}', space=vmem, size = 0x2000, scoped, tag = 'output window, operand 0, single buffered']
    #allocation3 [shape = 's32[1]{0}', space=sflag, size = 0x4, scoped, tag = 'scoped memory for positionwise_feed_forward.1']
    %10 = vsyncpa [#allocation3], 0
    // Predicated region
    $region2: #{positionwise_feed_forward.1} parent=1 // pred_check
      _
    $region3: #{positionwise_feed_forward.1} parent=1 // pred_check_branch
      %12 = sbr.rel (0) target = $region5
    $region4: #{positionwise_feed_forward.1} parent=1 // pred_region
      _
    $region5: #{positionwise_feed_forward.1} parent=1 // pred_fallthru
      _
    // Predicated region
    $region6: #{positionwise_feed_forward.1} parent=1 // pred_check
      _
    $region7: #{positionwise_feed_forward.1} parent=1 // pred_check_branch
      %14 = sbr.rel (0) target = $region9
    $region8: #{positionwise_feed_forward.1} parent=1 // pred_region
      _
    $region9: #{positionwise_feed_forward.1} parent=1 // pred_fallthru
      _
    // Predicated region
    $region10: #{positionwise_feed_forward.1} parent=1 // pred_check
      _
    $region11: #{positionwise_feed_forward.1} parent=1 // pred_check_branch
      %16 = sbr.rel (0) target = $region13
    $region12: #{positionwise_feed_forward.1} parent=1 // pred_region
      _
    $region13: #{positionwise_feed_forward.1} parent=1 // pred_fallthru
      _
    // Predicated region
    $region14: #{positionwise_feed_forward.1} parent=1 // pred_check
      _
    $region15: #{positionwise_feed_forward.1} parent=1 // pred_check_branch
      %18 = sbr.rel (0) target = $region17
    $region16: #{positionwise_feed_forward.1} parent=1 // pred_region
      _
    $region17: #{positionwise_feed_forward.1} parent=1 // pred_fallthru
      _
    // Predicated region
    $region18: #{positionwise_feed_forward.1} parent=1 // pred_check
      _
    $region19: #{positionwise_feed_forward.1} parent=1 // pred_check_branch
      %20 = sbr.rel (0) target = $region21
    $region20: #{positionwise_feed_forward.1} parent=1 // pred_region
      _
    $region21: #{positionwise_feed_forward.1} parent=1 // pred_fallthru
      _
    %v21 = vld [vmem:[%s0] sm:$0xff]
    %v22 = vld [vmem:[%s0 + $0x8] sm:$0xff]
    %v23 = vld [vmem:[%s1] sm:$0xff]
    %v24 = vld [vmem:[%s1 + $0x8] sm:$0xff]
    %v25 = vld [vmem:[%s1 + $0x10] sm:$0xff]
    %v26 = vld [vmem:[%s1 + $0x18] sm:$0xff]
    %v27 = vld [vmem:[%s2] sm:$0x1]
    %v29 = vlaneseq
    %v30 = vshrl.u32 %v29, 7
    %v31 = vsub.s32 0, %v30
    %v32 = vrot.slane %v27, %v31
    %vm34 = vcmask 261120
    %v36 = vsel %vm34, %v21, 0
    %v39 = vsel %vm34, %v22, 0
    %41 = vmatprep.subr.mxu0 0.0
    %42 = vmatpush1.msra.mxu0 0.0
    %43 = vmatprep.subr.mxu0 0.0
    %44 = vmatpush1.msra.mxu0 0.0
    %45 = vmatprep.subr.mxu0 0.0
    %46 = vmatpush1.msra.mxu0 0.0
    %47 = vmatprep.subr.mxu0 0.0
    %48 = vmatpush1.msra.mxu0 0.0
    %49 = vmatprep.subr.mxu0 0.0
    %50 = vmatpush1.msra.mxu0 0.0
    %51 = vmatprep.subr.mxu0 0.0
    %52 = vmatpush1.msra.mxu0 0.0
    %53 = vmatprep.subr.mxu0 0.0
    %54 = vmatpush1.msra.mxu0 0.0
    %55 = vmatprep.subr.mxu0 0.0
    %56 = vmatpush1.msra.mxu0 0.0
    %57 = vmatprep.subr.mxu0 0.0
    %58 = vmatpush1.msra.mxu0 0.0
    %59 = vmatprep.subr.mxu0 0.0
    %60 = vmatpush1.msra.mxu0 0.0
    %61 = vmatprep.subr.mxu0 0.0
    %62 = vmatpush1.msra.mxu0 0.0
    %63 = vmatprep.subr.mxu0 0.0
    %64 = vmatpush1.msra.mxu0 0.0
    %65 = vmatprep.subr.mxu0 0.0
    %66 = vmatpush1.msra.mxu0 %v26
    %67 = vmatprep.subr.mxu0 0.0
    %68 = vmatpush1.msra.mxu0 %v25
    %69 = vmatprep.subr.mxu0 0.0
    %70 = vmatpush1.msra.mxu0 %v24
    %71 = vmatprep.subr.mxu0 0.0
    %72 = vmatpush1.msra.mxu0 %v23
    %73 = vmatprep.subr.mxu0 0.0
    %74 = vmatpush2.msra.mxu0 0.0
    %75 = vmatprep.subr.mxu0 0.0
    %76 = vmatpush2.msra.mxu0 0.0
    %77 = vmatprep.subr.mxu0 0.0
    %78 = vmatpush2.msra.mxu0 0.0
    %79 = vmatprep.subr.mxu0 0.0
    %80 = vmatpush2.msra.mxu0 0.0
    %81 = vmatprep.subr.mxu0 0.0
    %82 = vmatpush2.msra.mxu0 0.0
    %83 = vmatprep.subr.mxu0 0.0
    %84 = vmatpush2.msra.mxu0 0.0
    %85 = vmatprep.subr.mxu0 0.0
    %86 = vmatpush2.msra.mxu0 0.0
    %87 = vmatprep.subr.mxu0 0.0
    %88 = vmatpush2.msra.mxu0 0.0
    %89 = vmatprep.subr.mxu0 0.0
    %90 = vmatpush2.msra.mxu0 0.0
    %91 = vmatprep.subr.mxu0 0.0
    %92 = vmatpush2.msra.mxu0 0.0
    %93 = vmatprep.subr.mxu0 0.0
    %94 = vmatpush2.msra.mxu0 0.0
    %95 = vmatprep.subr.mxu0 0.0
    %96 = vmatpush2.msra.mxu0 0.0
    %97 = vmatprep.subr.mxu0 0.0
    %98 = vmatpush2.msra.mxu0 0.0
    %99 = vmatprep.subr.mxu0 0.0
    %100 = vmatpush2.msra.mxu0 0.0
    %101 = vmatprep.subr.mxu0 0.0
    %102 = vmatpush2.msra.mxu0 0.0
    %103 = vmatprep.subr.mxu0 0.0
    %104 = vmatpush2.msra.mxu0 0.0
    %105 = vmatprep.mubr.f32.mxu0 0.0
    %106 = vmatmul.mubr.f32.gmra.mxu0 %v36
    %v107 = vpop.f32.mrf.mxu0
    %v108 = vadd.f32 %v32, %v107
    %v109 = vpop.f32.mrf.mxu0
    %110 = vmatprep.mubr.f32.mxu0 0.0
    %111 = vmatmul.mubr.f32.gmra.mxu0 %v39
    %v112 = vpop.f32.mrf.mxu0
    %v113 = vadd.f32 %v32, %v112
    %v114 = vpop.f32.mrf.mxu0
    %115 = vdwg.mxu0
    %v116 = vmax.f32 %v108, 0.0
    %v117 = vmax.f32 %v113, 0.0
    %v118 = vld [vmem:[%s3] sm:$0xff]
    %v119 = vld [vmem:[%s3 + $0x8] sm:$0xff]
    %v120 = vld [vmem:[%s3 + $0x10] sm:$0xff]
    %v121 = vld [vmem:[%s3 + $0x18] sm:$0xff]
    %v122 = vld [vmem:[%s3 + $0x20] sm:$0xff]
    %v123 = vld [vmem:[%s3 + $0x28] sm:$0xff]
    %v124 = vld [vmem:[%s3 + $0x30] sm:$0xff]
    %v125 = vld [vmem:[%s3 + $0x38] sm:$0xff]
    %v126 = vld [vmem:[%s4] sm:$0x1]
    %v128 = vlaneseq
    %v129 = vshrl.u32 %v128, 7
    %v130 = vsub.s32 0, %v129
    %v131 = vrot.slane %v126, %v130
    %vm133 = vcmask 523264
    %v135 = vsel %vm133, %v116, 0
    %v138 = vsel %vm133, %v117, 0
    %140 = vmatprep.subr.mxu0 0.0
    %141 = vmatpush1.msra.mxu0 0.0
    %142 = vmatprep.subr.mxu0 0.0
    %143 = vmatpush1.msra.mxu0 0.0
    %144 = vmatprep.subr.mxu0 0.0
    %145 = vmatpush1.msra.mxu0 0.0
    %146 = vmatprep.subr.mxu0 0.0
    %147 = vmatpush1.msra.mxu0 0.0
    %148 = vmatprep.subr.mxu0 0.0
    %149 = vmatpush1.msra.mxu0 0.0
    %150 = vmatprep.subr.mxu0 0.0
    %151 = vmatpush1.msra.mxu0 0.0
    %152 = vmatprep.subr.mxu0 0.0
    %153 = vmatpush1.msra.mxu0 0.0
    %154 = vmatprep.subr.mxu0 0.0
    %155 = vmatpush1.msra.mxu0 0.0
    %156 = vmatprep.subr.mxu0 0.0
    %157 = vmatpush1.msra.mxu0 %v125
    %158 = vmatprep.subr.mxu0 0.0
    %159 = vmatpush1.msra.mxu0 %v124
    %160 = vmatprep.subr.mxu0 0.0
    %161 = vmatpush1.msra.mxu0 %v123
    %162 = vmatprep.subr.mxu0 0.0
    %163 = vmatpush1.msra.mxu0 %v122
    %164 = vmatprep.subr.mxu0 0.0
    %165 = vmatpush1.msra.mxu0 %v121
    %166 = vmatprep.subr.mxu0 0.0
    %167 = vmatpush1.msra.mxu0 %v120
    %168 = vmatprep.subr.mxu0 0.0
    %169 = vmatpush1.msra.mxu0 %v119
    %170 = vmatprep.subr.mxu0 0.0
    %171 = vmatpush1.msra.mxu0 %v118
    %172 = vmatprep.subr.mxu0 0.0
    %173 = vmatpush2.msra.mxu0 0.0
    %174 = vmatprep.subr.mxu0 0.0
    %175 = vmatpush2.msra.mxu0 0.0
    %176 = vmatprep.subr.mxu0 0.0
    %177 = vmatpush2.msra.mxu0 0.0
    %178 = vmatprep.subr.mxu0 0.0
    %179 = vmatpush2.msra.mxu0 0.0
    %180 = vmatprep.subr.mxu0 0.0
    %181 = vmatpush2.msra.mxu0 0.0
    %182 = vmatprep.subr.mxu0 0.0
    %183 = vmatpush2.msra.mxu0 0.0
    %184 = vmatprep.subr.mxu0 0.0
    %185 = vmatpush2.msra.mxu0 0.0
    %186 = vmatprep.subr.mxu0 0.0
    %187 = vmatpush2.msra.mxu0 0.0
    %188 = vmatprep.subr.mxu0 0.0
    %189 = vmatpush2.msra.mxu0 0.0
    %190 = vmatprep.subr.mxu0 0.0
    %191 = vmatpush2.msra.mxu0 0.0
    %192 = vmatprep.subr.mxu0 0.0
    %193 = vmatpush2.msra.mxu0 0.0
    %194 = vmatprep.subr.mxu0 0.0
    %195 = vmatpush2.msra.mxu0 0.0
    %196 = vmatprep.subr.mxu0 0.0
    %197 = vmatpush2.msra.mxu0 0.0
    %198 = vmatprep.subr.mxu0 0.0
    %199 = vmatpush2.msra.mxu0 0.0
    %200 = vmatprep.subr.mxu0 0.0
    %201 = vmatpush2.msra.mxu0 0.0
    %202 = vmatprep.subr.mxu0 0.0
    %203 = vmatpush2.msra.mxu0 0.0
    %204 = vmatprep.mubr.f32.mxu0 0.0
    %205 = vmatmul.mubr.f32.gmra.mxu0 %v135
    %v206 = vpop.f32.mrf.mxu0
    %v207 = vadd.f32 %v131, %v206
    %v208 = vpop.f32.mrf.mxu0
    %209 = vmatprep.mubr.f32.mxu0 0.0
    %210 = vmatmul.mubr.f32.gmra.mxu0 %v138
    %v211 = vpop.f32.mrf.mxu0
    %v212 = vadd.f32 %v131, %v211
    %v213 = vpop.f32.mrf.mxu0
    %214 = vdwg.mxu0
    %215 = vst.msk [vmem:[#allocation2] sm:$0xff] %vm34, %v207
    %216 = vst.msk [vmem:[#allocation2 + $0x8] sm:$0xff] %vm34, %v212
    // Predicated region
    $region22: #{positionwise_feed_forward.1} parent=1 // pred_check
      _
    $region23: #{positionwise_feed_forward.1} parent=1 // pred_check_branch
      %218 = sbr.rel (0) target = $region25
    $region24: #{positionwise_feed_forward.1} parent=1 // pred_region
      %s220 = ssub.s32 256, 256
      %221 = vsyncadd [#allocation3], %s220
      %s222 = sshll.u32 [#allocation2], 4
      %s223 = int_to_ptr.vmem [resolvable:$true] %s222
      %228 = dma.vmem_to_hbm [thread:$0]  %s223, 256, %s5, [#allocation3], 128, 128, 8
    $region25: #{positionwise_feed_forward.1} parent=1 // pred_fallthru
      _
    // Predicated region
    $region26: #{positionwise_feed_forward.1} parent=1 // pred_check
      _
    $region27: #{positionwise_feed_forward.1} parent=1 // pred_check_branch
      %230 = sbr.rel (0) target = $region29
    $region28: #{positionwise_feed_forward.1} parent=1 // pred_region
      %231 = dma.done [#allocation3], 256
    $region29: #{positionwise_feed_forward.1} parent=1 // pred_fallthru
      _
    %232 = vsyncpa [#allocation3], 1

</llo_original>
